<compile_context>
chip_gen: v6e
topology: v6e:2x2x1
jax: 0.10.0
libtpu: 0.0.40
codegen_flags: <defaults>
</compile_context>

<pallas_src>
import functools

import jax
import jax.numpy as jnp
from jax.experimental import pallas as pl
from jax.experimental.pallas import tpu as pltpu

BN_EPS = 1e-5


def _conv_acc(x_f32, w_ref, col_ref, *, cin, l, d):
    """Dilated k=3 conv for one batch row, NCL layout.

    x_f32   : (Cin, L) f32 value (channels on sublanes, L on lanes)
    w_ref   : (3, G, Cin) ref, w_ref[k] == torch_weight[:, :, k]
    col_ref : (Cin, L + 2*d) VMEM scratch (zero-padded copy of x)
    returns : (G, L) float32 conv output
    """
    # Refresh the zero halo (tiny: Cin x d lanes per side) and write x ONCE.
    # The whole scratch region that the matmuls read is rewritten every step,
    # so this is megacore-safe with the 'parallel' grid axis.
    if d > 0:
        col_ref[:, 0:d] = jnp.zeros((cin, d), jnp.float32)
        col_ref[:, l + d:l + 2 * d] = jnp.zeros((cin, d), jnp.float32)
    col_ref[:, d:d + l] = x_f32

    # 3 accumulating MXU matmuls over the lane-shifted views of the padded x.
    # Output col t of tap k reads padded col t + k*d  ==  x col t + (k-1)*d.
    y = jnp.dot(w_ref[0], col_ref[:, 0:l],
                preferred_element_type=jnp.float32)
    for k in range(1, 3):  # static unroll over the remaining taps
        y = y + jnp.dot(w_ref[k], col_ref[:, k * d:k * d + l],
                        preferred_element_type=jnp.float32)
    return y


def _conv_stats_kernel(x_ref, w_ref, stats_ref, col_ref, *, cin, l, d):
    # Pass 1: conv + per-row channel sums (E[y] / E[y^2] partials).
    y = _conv_acc(x_ref[0].astype(jnp.float32), w_ref, col_ref,
                  cin=cin, l=l, d=d)                               # (G, L)
    s1 = jnp.sum(y, axis=1, keepdims=True)                          # (G, 1)
    s2 = jnp.sum(y * y, axis=1, keepdims=True)                      # (G, 1)
    stats_ref[0] = jnp.concatenate([s1, s2], axis=1)                # one store


def _bn_silu_concat_kernel(x_ref, w_ref, scale_ref, shift_ref, out_ref,
                           col_ref, *, cin, l, d):
    # Pass 2: conv recompute + folded BN affine + SiLU + concat with input.
    x = x_ref[0].astype(jnp.float32)                                # (Cin, L)
    y = _conv_acc(x, w_ref, col_ref, cin=cin, l=l, d=d)             # (G, L)
    yh = y * scale_ref[...] + shift_ref[...]                        # (G,1) bcast
    act = yh * jax.nn.sigmoid(yh)                                   # SiLU
    # Build the (Cin+G, L) tile in registers; one lane-dense store (Cin is not
    # a sublane multiple, so two separate stores would both be partial).
    out_ref[0] = jnp.concatenate([x, act], axis=0).astype(out_ref.dtype)


def dense_layer_1d(x_ncl, weight, gamma, beta, *, dilation):
    """x_ncl: (N, Cin, L) float32; weight: (G, Cin, 3) (PyTorch OIH layout)."""
    n, cin, l = x_ncl.shape
    g = weight.shape[0]
    d = dilation

    # (G, Cin, 3) -> (3, G, Cin): tap-major so each tap is a clean (G, Cin)
    # sublane-aligned block (no lane-offset weight slicing in the kernel).
    w3d = jnp.transpose(weight, (2, 0, 1))

    x_spec = pl.BlockSpec((1, cin, l), lambda i: (i, 0, 0))
    w_spec = pl.BlockSpec((3, g, cin), lambda i: (0, 0, 0))
    col_scratch = pltpu.VMEM((cin, l + 2 * d), jnp.float32)
    cparams = pltpu.CompilerParams(
        dimension_semantics=("parallel",),      # v7x: 2 TCs split the batch
        vmem_limit_bytes=64 * 1024 * 1024,      # headroom for larger L tiles
    )

    # ---- pass 1: conv + per-row channel sum / sumsq -------------------------
    stats = pl.pallas_call(
        functools.partial(_conv_stats_kernel, cin=cin, l=l, d=d),
        out_shape=jax.ShapeDtypeStruct((n, g, 2), jnp.float32),
        grid=(n,),
        in_specs=[x_spec, w_spec],
        out_specs=pl.BlockSpec((1, g, 2), lambda i: (i, 0, 0)),
        scratch_shapes=[col_scratch],
        compiler_params=cparams,
    )(x_ncl, w3d)

    # ---- tiny BN reduction + affine fold (2*G floats) in plain JAX ----------
    count = float(n * l)
    mean = jnp.sum(stats[..., 0], axis=0) / count
    var = jnp.sum(stats[..., 1], axis=0) / count - mean * mean      # biased var
    inv = jax.lax.rsqrt(var + BN_EPS)
    scale = (gamma * inv).reshape(g, 1).astype(jnp.float32)
    shift = (beta - mean * gamma * inv).reshape(g, 1).astype(jnp.float32)

    # ---- pass 2: conv + BN apply + SiLU + concat ----------------------------
    # Recompute the conv (2*G >= Cin here, so re-reading x is cheaper than a
    # y round trip through HBM); if production configs have G << Cin, write y
    # in pass 1 and read it back here instead.
    out = pl.pallas_call(
        functools.partial(_bn_silu_concat_kernel, cin=cin, l=l, d=d),
        out_shape=jax.ShapeDtypeStruct((n, cin + g, l), x_ncl.dtype),
        grid=(n,),
        in_specs=[x_spec, w_spec,
                  pl.BlockSpec((g, 1), lambda i: (0, 0)),
                  pl.BlockSpec((g, 1), lambda i: (0, 0))],
        out_specs=pl.BlockSpec((1, cin + g, l), lambda i: (i, 0, 0)),
        scratch_shapes=[col_scratch],
        compiler_params=cparams,
    )(x_ncl, w3d, scale, shift)
    return out                                                      # (N, Cin+G, L)


def _reference(x_ncl, weight, gamma, beta, *, dilation):
    d = dilation
    y = jax.lax.conv_general_dilated(
        x_ncl, weight, window_strides=(1,), padding=[(d, d)],
        rhs_dilation=(d,), dimension_numbers=("NCH", "OIH", "NCH"))
    mean = jnp.mean(y, axis=(0, 2), keepdims=True)
    var = jnp.mean((y - mean) ** 2, axis=(0, 2), keepdims=True)
    y = (y - mean) * jax.lax.rsqrt(var + BN_EPS)
    y = y * gamma.reshape(1, -1, 1) + beta.reshape(1, -1, 1)
    y = y * jax.nn.sigmoid(y)
    return jnp.concatenate([x_ncl, y], axis=1)


if __name__ == "__main__":
    # DenseLayer1D(num_input=4, growth_rate=8, i_layer=1, mul_dilate=1)
    num_input, growth_rate, i_layer, mul_dilate = 4, 8, 1, 1
    dilation = i_layer * mul_dilate + 1  # = padding = 2
    batch, length = 2, 16

    key = jax.random.PRNGKey(0)
    kx, kw = jax.random.split(key)
    x = jax.random.normal(kx, (batch, num_input, length), dtype=jnp.float32)
    # Conv1d weight shape (out, in, kernel) = (G, Cin, 3); deterministic init.
    weight = jax.random.normal(kw, (growth_rate, num_input, 3), dtype=jnp.float32) * 0.1
    # BatchNorm1d default init: gamma=1, beta=0 (running stats unused in train mode).
    gamma = jnp.ones((growth_rate,), jnp.float32)
    beta = jnp.zeros((growth_rate,), jnp.float32)

    out = dense_layer_1d(x, weight, gamma, beta, dilation=dilation)
    out = jax.block_until_ready(out)

    ref = _reference(x, weight, gamma, beta, dilation=dilation)
    assert out.shape == (batch, num_input + growth_rate, length)
    assert jnp.allclose(out, ref, atol=1e-4, rtol=1e-4), "mismatch vs reference"

    print("KERNEL_OK")
</pallas_src>

<mosaic_0001>
module attributes {stable_mosaic.version = 11 : i64} {
  func.func @_conv_stats_kernel(%arg0: i32, %arg1: memref<1x4x16xf32, #tpu.memory_space<vmem>>, %arg2: memref<3x8x4xf32, #tpu.memory_space<vmem>>, %arg3: memref<1x8x2xf32, #tpu.memory_space<vmem>>, %arg4: memref<4x20xf32, #tpu.memory_space<vmem>>) attributes {dimension_semantics = [#tpu.dimension_semantics<parallel>], iteration_bounds = array<i64: 2>, scalar_prefetch = 0 : i64, scratch_operands = 1 : i64, tpu.core_type = #tpu.core_type<tc>, window_params = [{transform_indices = @transform_0, window_bounds = array<i64: 1, 4, 16>}, {pipeline_mode = #tpu.pipeline_mode<synchronous>, transform_indices = @transform_1, window_bounds = array<i64: 3, 8, 4>}, {transform_indices = @transform_2, window_bounds = array<i64: 1, 8, 2>}]} {
    %c0 = arith.constant 0 : index
    %c0_0 = arith.constant 0 : index
    %c0_1 = arith.constant 0 : index
    %0 = vector.load %arg1[%c0, %c0_0, %c0_1] : memref<1x4x16xf32, #tpu.memory_space<vmem>>, vector<1x4x16xf32>
    %1 = vector.shape_cast %0 : vector<1x4x16xf32> to vector<4x16xf32>
    %cst = arith.constant 0.000000e+00 : f32
    %2 = vector.broadcast %cst : f32 to vector<4x2xf32>
    %c0_2 = arith.constant 0 : index
    %c0_3 = arith.constant 0 : index
    %3 = vector.load %arg4[%c0_2, %c0_3] : memref<4x20xf32, #tpu.memory_space<vmem>>, vector<4x2xf32>
    tpu.vector_store %arg4[%c0_2, %c0_3], %2 {strides = array<i32>} : memref<4x20xf32, #tpu.memory_space<vmem>>, vector<4x2xf32>,
    %cst_4 = arith.constant 0.000000e+00 : f32
    %4 = vector.broadcast %cst_4 : f32 to vector<4x2xf32>
    %c0_5 = arith.constant 0 : index
    %c18 = arith.constant 18 : index
    %5 = vector.load %arg4[%c0_5, %c18] : memref<4x20xf32, #tpu.memory_space<vmem>>, vector<4x2xf32>
    tpu.vector_store %arg4[%c0_5, %c18], %4 {strides = array<i32>} : memref<4x20xf32, #tpu.memory_space<vmem>>, vector<4x2xf32>,
    %c0_6 = arith.constant 0 : index
    %c2 = arith.constant 2 : index
    %6 = vector.load %arg4[%c0_6, %c2] : memref<4x20xf32, #tpu.memory_space<vmem>>, vector<4x16xf32>
    tpu.vector_store %arg4[%c0_6, %c2], %1 {strides = array<i32>} : memref<4x20xf32, #tpu.memory_space<vmem>>, vector<4x16xf32>,
    %c0_7 = arith.constant 0 : index
    %c0_8 = arith.constant 0 : index
    %c0_9 = arith.constant 0 : index
    %7 = vector.load %arg2[%c0_7, %c0_8, %c0_9] : memref<3x8x4xf32, #tpu.memory_space<vmem>>, vector<1x8x4xf32>
    %8 = vector.shape_cast %7 : vector<1x8x4xf32> to vector<8x4xf32>
    %c0_10 = arith.constant 0 : index
    %c0_11 = arith.constant 0 : index
    %9 = vector.load %arg4[%c0_10, %c0_11] : memref<4x20xf32, #tpu.memory_space<vmem>>, vector<4x16xf32>
    %cst_12 = arith.constant dense<0.000000e+00> : vector<8x16xf32>
    %10 = tpu.matmul %8, %9, %cst_12 {dimension_numbers = #tpu.dot_dimension_numbers<[1], [0], [0], [1], [0, 0, 1, 1], [], []>} : vector<8x4xf32>, vector<4x16xf32>, vector<8x16xf32> -> vector<8x16xf32>
    %c1 = arith.constant 1 : index
    %c0_13 = arith.constant 0 : index
    %c0_14 = arith.constant 0 : index
    %11 = vector.load %arg2[%c1, %c0_13, %c0_14] : memref<3x8x4xf32, #tpu.memory_space<vmem>>, vector<1x8x4xf32>
    %12 = vector.shape_cast %11 : vector<1x8x4xf32> to vector<8x4xf32>
    %c0_15 = arith.constant 0 : index
    %c2_16 = arith.constant 2 : index
    %13 = vector.load %arg4[%c0_15, %c2_16] : memref<4x20xf32, #tpu.memory_space<vmem>>, vector<4x16xf32>
    %cst_17 = arith.constant dense<0.000000e+00> : vector<8x16xf32>
    %14 = tpu.matmul %12, %13, %cst_17 {dimension_numbers = #tpu.dot_dimension_numbers<[1], [0], [0], [1], [0, 0, 1, 1], [], []>} : vector<8x4xf32>, vector<4x16xf32>, vector<8x16xf32> -> vector<8x16xf32>
    %15 = arith.addf %10, %14 : vector<8x16xf32>
    %c2_18 = arith.constant 2 : index
    %c0_19 = arith.constant 0 : index
    %c0_20 = arith.constant 0 : index
    %16 = vector.load %arg2[%c2_18, %c0_19, %c0_20] : memref<3x8x4xf32, #tpu.memory_space<vmem>>, vector<1x8x4xf32>
    %17 = vector.shape_cast %16 : vector<1x8x4xf32> to vector<8x4xf32>
    %c0_21 = arith.constant 0 : index
    %c4 = arith.constant 4 : index
    %18 = vector.load %arg4[%c0_21, %c4] : memref<4x20xf32, #tpu.memory_space<vmem>>, vector<4x16xf32>
    %cst_22 = arith.constant dense<0.000000e+00> : vector<8x16xf32>
    %19 = tpu.matmul %17, %18, %cst_22 {dimension_numbers = #tpu.dot_dimension_numbers<[1], [0], [0], [1], [0, 0, 1, 1], [], []>} : vector<8x4xf32>, vector<4x16xf32>, vector<8x16xf32> -> vector<8x16xf32>
    %20 = arith.addf %15, %19 : vector<8x16xf32>
    %cst_23 = arith.constant dense<0.000000e+00> : vector<8xf32>
    %21 = vector.multi_reduction <add>, %20, %cst_23 [1] : vector<8x16xf32> to vector<8xf32>
    %22 = vector.shape_cast %21 : vector<8xf32> to vector<8x1xf32>
    %23 = arith.mulf %20, %20 : vector<8x16xf32>
    %cst_24 = arith.constant dense<0.000000e+00> : vector<8xf32>
    %24 = vector.multi_reduction <add>, %23, %cst_24 [1] : vector<8x16xf32> to vector<8xf32>
    %25 = vector.shape_cast %24 : vector<8xf32> to vector<8x1xf32>
    %26 = tpu.concatenate %22, %25 in 1 : vector<8x1xf32>, vector<8x1xf32> -> vector<8x2xf32>
    %c0_25 = arith.constant 0 : index
    %c0_26 = arith.constant 0 : index
    %c0_27 = arith.constant 0 : index
    %27 = vector.load %arg3[%c0_25, %c0_26, %c0_27] : memref<1x8x2xf32, #tpu.memory_space<vmem>>, vector<1x8x2xf32>
    %28 = vector.shape_cast %27 : vector<1x8x2xf32> to vector<8x2xf32>
    %29 = vector.shape_cast %26 : vector<8x2xf32> to vector<1x8x2xf32>
    tpu.vector_store %arg3[%c0_25, %c0_26, %c0_27], %29 {strides = array<i32>} : memref<1x8x2xf32, #tpu.memory_space<vmem>>, vector<1x8x2xf32>,
    return
  }
  func.func @transform_0(%arg0: i32) -> (i32, i32, i32) {
    %c0_i32 = arith.constant 0 : i32
    %c0_i32_0 = arith.constant 0 : i32
    %c0_i32_1 = arith.constant 0 : i32
    return %arg0, %c0_i32, %c0_i32_0 : i32, i32, i32
  }
  func.func @transform_1(%arg0: i32) -> (i32, i32, i32) {
    %c0_i32 = arith.constant 0 : i32
    %c0_i32_0 = arith.constant 0 : i32
    %c0_i32_1 = arith.constant 0 : i32
    %c0_i32_2 = arith.constant 0 : i32
    return %c0_i32, %c0_i32_0, %c0_i32_1 : i32, i32, i32
  }
  func.func @transform_2(%arg0: i32) -> (i32, i32, i32) {
    %c0_i32 = arith.constant 0 : i32
    %c0_i32_0 = arith.constant 0 : i32
    %c0_i32_1 = arith.constant 0 : i32
    return %arg0, %c0_i32, %c0_i32_0 : i32, i32, i32
  }
}

</mosaic_0001>

<llo_original>
// kernel: tpu_custom_call.1
$region0: #{tpu_custom_call.1}
  #allocation0 [shape = 'u32[]', space=smem, size = 0x4, offset = 0x4, fixed_abs, tag = 'smem constant byte address 0x4 - core index']
  #allocation1 [shape = 'u32[144,128]{1,0:T(1,128)}', space=vmem, size = 0x12000, scoped, tag = 'internal scratch']
  #allocation2 [shape = 'f32[4,20]{1,0:T(4,128)}', space=vmem, size = 0x800, scoped, tag = 'scratch operand']
  %s0 = inlined_call_operand.vmem [shape: f32[2,4,16], index: 0, kind: input, shape index: {}]
  %s1 = inlined_call_operand.vmem [shape: f32[3,8,4], index: 1, kind: input, shape index: {}]
  %s2 = inlined_call_operand.vmem [shape: f32[2,8,2], index: 2, kind: output, shape index: {}]
  %s3 = sld [smem:[#allocation0]]
  $region41: #{tpu_custom_call.1} parent=0
    _
  %s5 = ssub.s32 1, %s3
  %s6 = scalar_select 0, %s5, %s3
  loop: start=0, step=1, limit=4
  $region2: #{tpu_custom_call.1} parent=0 // loop_pre_header
    _
  $region3: #{tpu_custom_call.1} parent=0 // loop_header
    %s8 = sphi 0, %s12
    %p9 = scmp.ge.s32.totalorder %s8, 4
    %s18 = sphi 0, %s20
    %s21 = sphi 0, %s18
    %s22 = sphi 0, %s21
    %s38 = sphi 0, %s22
    %s42 = sphi 0, %s42
    %s44 = sphi 0, %s42
    %s45 = sphi 0, %s44
    %s59 = sphi 0, %s45
    %s65 = sphi 0, %s67
    %s68 = sphi 0, %s65
    %s69 = sphi 0, %s68
    %s85 = sphi 0, %s69
  $region4: #{tpu_custom_call.1} parent=0 // loop_header_branch
    %11 = sbr.rel (%p9) target = $region8
  $region5: #{tpu_custom_call.1} parent=0 // loop_body
    %s13 = ssub.s32 %s8, 1
    %s14 = ssub.s32 %s8, 2
    %s15 = sadd.s32 %s8, 1
    %s16 = ssub.s32 %s8, %s15
    %p17 = scmp.eq.s32.totalorder %s16, 0
    %s19 = sadd.s32 %s18, 1
    %s20 = scalar_select %p17, %s18, %s19
    %p23 = pneg %p17
    %p24 = scmp.eq.s32.totalorder %s8, 1
    %p25 = por %p23, %p24
    %p26 = scmp.ne.s32.totalorder %s18, %s21
    %p27 = scmp.eq.s32.totalorder %s8, 0
    %p28 = por %p26, %p27
    %p29 = scmp.ne.s32.totalorder %s18, %s21
    %p30 = scmp.eq.s32.totalorder %s13, 1
    %p31 = por %p29, %p30
    %p32 = scmp.ne.s32.totalorder %s21, %s22
    %p33 = scmp.eq.s32.totalorder %s13, 0
    %p34 = por %p32, %p33
    %p35 = scmp.ne.s32.totalorder %s21, %s22
    %p36 = scmp.eq.s32.totalorder %s14, 1
    %p37 = por %p35, %p36
    %p39 = scmp.ne.s32.totalorder %s22, %s38
    %p40 = scmp.eq.s32.totalorder %s14, 0
    %p41 = por %p39, %p40
    %s43 = sadd.s32 %s42, 1
    %p46 = scmp.eq.s32.totalorder %s8, 1
    %p47 = scmp.ne.s32.totalorder %s42, %s44
    %p48 = scmp.eq.s32.totalorder %s8, 0
    %p49 = por %p47, %p48
    %p50 = scmp.ne.s32.totalorder %s42, %s44
    %p51 = scmp.eq.s32.totalorder %s13, 1
    %p52 = por %p50, %p51
    %p53 = scmp.ne.s32.totalorder %s44, %s45
    %p54 = scmp.eq.s32.totalorder %s13, 0
    %p55 = por %p53, %p54
    %p56 = scmp.ne.s32.totalorder %s44, %s45
    %p57 = scmp.eq.s32.totalorder %s14, 1
    %p58 = por %p56, %p57
    %p60 = scmp.ne.s32.totalorder %s45, %s59
    %p61 = scmp.eq.s32.totalorder %s14, 0
    %p62 = por %p60, %p61
    %s63 = ssub.s32 %s8, %s15
    %p64 = scmp.eq.s32.totalorder %s63, 0
    %s66 = sadd.s32 %s65, 1
    %s67 = scalar_select %p64, %s65, %s66
    %p70 = pneg %p64
    %p71 = scmp.eq.s32.totalorder %s8, 1
    %p72 = por %p70, %p71
    %p73 = scmp.ne.s32.totalorder %s65, %s68
    %p74 = scmp.eq.s32.totalorder %s8, 0
    %p75 = por %p73, %p74
    %p76 = scmp.ne.s32.totalorder %s65, %s68
    %p77 = scmp.eq.s32.totalorder %s13, 1
    %p78 = por %p76, %p77
    %p79 = scmp.ne.s32.totalorder %s68, %s69
    %p80 = scmp.eq.s32.totalorder %s13, 0
    %p81 = por %p79, %p80
    %p82 = scmp.ne.s32.totalorder %s68, %s69
    %p83 = scmp.eq.s32.totalorder %s14, 1
    %p84 = por %p82, %p83
    %p86 = scmp.ne.s32.totalorder %s69, %s85
    %p87 = scmp.eq.s32.totalorder %s14, 0
    %p88 = por %p86, %p87
    %p89 = scmp.le.s32.totalorder 1, %s8
    %p90 = scmp.lt.s32.totalorder %s8, 3
    %p91 = pnand %p89, %p90
    %p92 = pneg %p91
    // Predicated region
    $region9: #{tpu_custom_call.1} parent=5 // pred_check
      _
    $region10: #{tpu_custom_call.1} parent=5 // pred_check_branch
      %94 = sbr.rel (%p91) target = $region12
    $region11: #{tpu_custom_call.1} parent=5 // pred_region
      %s95 = ssub.s32 %s8, 1
      // Predicated region
      $region13: #{tpu_custom_call.1} parent=11 // pred_check
        %p96 = pneg %p55
      $region14: #{tpu_custom_call.1} parent=11 // pred_check_branch
        %98 = sbr.rel (%p96) target = $region16
      $region15: #{tpu_custom_call.1} parent=11 // pred_region
        _
      $region16: #{tpu_custom_call.1} parent=11 // pred_fallthru
        _
    $region12: #{tpu_custom_call.1} parent=5 // pred_fallthru
      _
    %p99 = scmp.lt.s32.totalorder %s8, 2
    // Predicated region
    $region17: #{tpu_custom_call.1} parent=5 // pred_check
      %p100 = pneg %p99
    $region18: #{tpu_custom_call.1} parent=5 // pred_check_branch
      %102 = sbr.rel (%p100) target = $region20
    $region19: #{tpu_custom_call.1} parent=5 // pred_region
      // Predicated region
      $region21: #{tpu_custom_call.1} parent=19 // pred_check
        %p103 = pneg %p28
      $region22: #{tpu_custom_call.1} parent=19 // pred_check_branch
        %105 = sbr.rel (%p103) target = $region24
      $region23: #{tpu_custom_call.1} parent=19 // pred_region
        %p106 = scmp.lt.s32.totalorder %s8, 1
        %s107 = scalar_select %p106, %s8, 1
        %s108 = smul.addr %s107, 4
        %s109 = scalar_lea.vmem %s0, %s108
      $region24: #{tpu_custom_call.1} parent=19 // pred_fallthru
        _
    $region20: #{tpu_custom_call.1} parent=5 // pred_fallthru
      _
    %p110 = scmp.le.s32.totalorder 1, %s8
    %p111 = scmp.lt.s32.totalorder %s8, 3
    %p112 = pnand %p110, %p111
    %p113 = pneg %p112
    // Predicated region
    $region25: #{tpu_custom_call.1} parent=5 // pred_check
      _
    $region26: #{tpu_custom_call.1} parent=5 // pred_check_branch
      %115 = sbr.rel (%p112) target = $region28
    $region27: #{tpu_custom_call.1} parent=5 // pred_region
      %s116 = ssub.s32 %s8, 1
      %p117 = scmp.lt.s32.totalorder %s13, 1
      %s118 = scalar_select %p117, %s13, 1
      %s119 = smul.addr %s118, 4
      %s120 = scalar_lea.vmem %s0, %s119
      %p121 = pneg %p34
      %p122 = pneg %p31
      %p123 = pneg %p55
      %p124 = pneg %p52
      %p125 = pneg %p81
      %p126 = pneg %p78
      %p127 = scmp.lt.s32.totalorder %s13, 1
      %s128 = scalar_select %p127, %s13, 1
      %s129 = smul.addr %s128, 8
      %s130 = scalar_lea.vmem %s2, %s129
      %p131 = scmp.lt.s32.totalorder %s13, 1
      %s132 = scalar_select %p131, %s13, 1
      %s133 = smul.addr %s132, 4
      %s134 = scalar_lea.vmem %s0, %s133
      %p135 = scmp.lt.s32.totalorder %s13, 1
      %s136 = scalar_select %p135, %s13, 1
      %s137 = smul.addr %s136, 8
      %s138 = scalar_lea.vmem %s2, %s137
      %v139 = vld [vmem:[%s134] sm:$0xf]
      %vm140 = vcmask 11264
      %141 = vst.msk [vmem:[#allocation2] sm:$0xf] %vm140, 0.0
      %vm142 = vcmask 158864
      %143 = vst.msk [vmem:[#allocation2] sm:$0xf] %vm142, 0.0
      %145 = vrot.lane.b32.xlu0 %v139, 2
      %v146 = vpop.permute.xlu0 %145
      %vm148 = vcmask 142352
      %149 = vst.msk [vmem:[#allocation2] sm:$0xf] %vm148, %v146
      %v150 = vld [vmem:[%s1] sm:$0xff]
      %v151 = vld [vmem:[#allocation2] sm:$0xf]
      %s152 = scalar_lea.vmem %s1, 8
      %v153 = vld [vmem:[%s152] sm:$0xff]
      %155 = vrot.lane.b32.xlu0 %v151, 126
      %v156 = vpop.permute.xlu0 %155
      %vm157 = vcmask 31744
      %v159 = vsel %vm157, %v153, 0
      %vm161 = vcmask 1043456
      %v162 = vsel %vm161, %v156, 0
      %164 = vmatprep.subr.mxu0 0.0
      %165 = vmatpush1.msra.mxu0 0.0
      %166 = vmatprep.subr.mxu0 0.0
      %167 = vmatpush1.msra.mxu0 0.0
      %168 = vmatprep.subr.mxu0 0.0
      %169 = vmatpush1.msra.mxu0 0.0
      %170 = vmatprep.subr.mxu0 0.0
      %171 = vmatpush1.msra.mxu0 0.0
      %172 = vmatprep.subr.mxu0 0.0
      %173 = vmatpush1.msra.mxu0 0.0
      %174 = vmatprep.subr.mxu0 0.0
      %175 = vmatpush1.msra.mxu0 0.0
      %176 = vmatprep.subr.mxu0 0.0
      %177 = vmatpush1.msra.mxu0 0.0
      %178 = vmatprep.subr.mxu0 0.0
      %179 = vmatpush1.msra.mxu0 0.0
      %180 = vmatprep.subr.mxu0 0.0
      %181 = vmatpush1.msra.mxu0 0.0
      %182 = vmatprep.subr.mxu0 0.0
      %183 = vmatpush1.msra.mxu0 0.0
      %184 = vmatprep.subr.mxu0 0.0
      %185 = vmatpush1.msra.mxu0 0.0
      %186 = vmatprep.subr.mxu0 0.0
      %187 = vmatpush1.msra.mxu0 0.0
      %188 = vmatprep.subr.mxu0 0.0
      %189 = vmatpush1.msra.mxu0 0.0
      %190 = vmatprep.subr.mxu0 0.0
      %191 = vmatpush1.msra.mxu0 0.0
      %192 = vmatprep.subr.mxu0 0.0
      %193 = vmatpush1.msra.mxu0 0.0
      %194 = vmatprep.subr.mxu0 0.0
      %195 = vmatpush1.msra.mxu0 %v162
      %196 = vmatprep.subr.mxu0 0.0
      %197 = vmatpush2.msra.mxu0 0.0
      %198 = vmatprep.subr.mxu0 0.0
      %199 = vmatpush2.msra.mxu0 0.0
      %200 = vmatprep.subr.mxu0 0.0
      %201 = vmatpush2.msra.mxu0 0.0
      %202 = vmatprep.subr.mxu0 0.0
      %203 = vmatpush2.msra.mxu0 0.0
      %204 = vmatprep.subr.mxu0 0.0
      %205 = vmatpush2.msra.mxu0 0.0
      %206 = vmatprep.subr.mxu0 0.0
      %207 = vmatpush2.msra.mxu0 0.0
      %208 = vmatprep.subr.mxu0 0.0
      %209 = vmatpush2.msra.mxu0 0.0
      %210 = vmatprep.subr.mxu0 0.0
      %211 = vmatpush2.msra.mxu0 0.0
      %212 = vmatprep.subr.mxu0 0.0
      %213 = vmatpush2.msra.mxu0 0.0
      %214 = vmatprep.subr.mxu0 0.0
      %215 = vmatpush2.msra.mxu0 0.0
      %216 = vmatprep.subr.mxu0 0.0
      %217 = vmatpush2.msra.mxu0 0.0
      %218 = vmatprep.subr.mxu0 0.0
      %219 = vmatpush2.msra.mxu0 0.0
      %220 = vmatprep.subr.mxu0 0.0
      %221 = vmatpush2.msra.mxu0 0.0
      %222 = vmatprep.subr.mxu0 0.0
      %223 = vmatpush2.msra.mxu0 0.0
      %224 = vmatprep.subr.mxu0 0.0
      %225 = vmatpush2.msra.mxu0 0.0
      %226 = vmatprep.subr.mxu0 0.0
      %227 = vmatpush2.msra.mxu0 0.0
      %228 = vmatprep.mubr.f32.mxu0 0.0
      %229 = vmatmul.mubr.f32.gmra.mxu0 %v159
      %v230 = vpop.f32.mrf.mxu0
      %v231 = vadd.f32 0.0, %v230
      %v232 = vpop.f32.mrf.mxu0
      %233 = vdwg.mxu0
      %v235 = vsel %vm157, %v150, 0
      %v237 = vsel %vm161, %v151, 0
      %239 = vmatprep.subr.mxu0 0.0
      %240 = vmatpush1.msra.mxu0 0.0
      %241 = vmatprep.subr.mxu0 0.0
      %242 = vmatpush1.msra.mxu0 0.0
      %243 = vmatprep.subr.mxu0 0.0
      %244 = vmatpush1.msra.mxu0 0.0
      %245 = vmatprep.subr.mxu0 0.0
      %246 = vmatpush1.msra.mxu0 0.0
      %247 = vmatprep.subr.mxu0 0.0
      %248 = vmatpush1.msra.mxu0 0.0
      %249 = vmatprep.subr.mxu0 0.0
      %250 = vmatpush1.msra.mxu0 0.0
      %251 = vmatprep.subr.mxu0 0.0
      %252 = vmatpush1.msra.mxu0 0.0
      %253 = vmatprep.subr.mxu0 0.0
      %254 = vmatpush1.msra.mxu0 0.0
      %255 = vmatprep.subr.mxu0 0.0
      %256 = vmatpush1.msra.mxu0 0.0
      %257 = vmatprep.subr.mxu0 0.0
      %258 = vmatpush1.msra.mxu0 0.0
      %259 = vmatprep.subr.mxu0 0.0
      %260 = vmatpush1.msra.mxu0 0.0
      %261 = vmatprep.subr.mxu0 0.0
      %262 = vmatpush1.msra.mxu0 0.0
      %263 = vmatprep.subr.mxu0 0.0
      %264 = vmatpush1.msra.mxu0 0.0
      %265 = vmatprep.subr.mxu0 0.0
      %266 = vmatpush1.msra.mxu0 0.0
      %267 = vmatprep.subr.mxu0 0.0
      %268 = vmatpush1.msra.mxu0 0.0
      %269 = vmatprep.subr.mxu0 0.0
      %270 = vmatpush1.msra.mxu0 %v237
      %271 = vmatprep.subr.mxu0 0.0
      %272 = vmatpush2.msra.mxu0 0.0
      %273 = vmatprep.subr.mxu0 0.0
      %274 = vmatpush2.msra.mxu0 0.0
      %275 = vmatprep.subr.mxu0 0.0
      %276 = vmatpush2.msra.mxu0 0.0
      %277 = vmatprep.subr.mxu0 0.0
      %278 = vmatpush2.msra.mxu0 0.0
      %279 = vmatprep.subr.mxu0 0.0
      %280 = vmatpush2.msra.mxu0 0.0
      %281 = vmatprep.subr.mxu0 0.0
      %282 = vmatpush2.msra.mxu0 0.0
      %283 = vmatprep.subr.mxu0 0.0
      %284 = vmatpush2.msra.mxu0 0.0
      %285 = vmatprep.subr.mxu0 0.0
      %286 = vmatpush2.msra.mxu0 0.0
      %287 = vmatprep.subr.mxu0 0.0
      %288 = vmatpush2.msra.mxu0 0.0
      %289 = vmatprep.subr.mxu0 0.0
      %290 = vmatpush2.msra.mxu0 0.0
      %291 = vmatprep.subr.mxu0 0.0
      %292 = vmatpush2.msra.mxu0 0.0
      %293 = vmatprep.subr.mxu0 0.0
      %294 = vmatpush2.msra.mxu0 0.0
      %295 = vmatprep.subr.mxu0 0.0
      %296 = vmatpush2.msra.mxu0 0.0
      %297 = vmatprep.subr.mxu0 0.0
      %298 = vmatpush2.msra.mxu0 0.0
      %299 = vmatprep.subr.mxu0 0.0
      %300 = vmatpush2.msra.mxu0 0.0
      %301 = vmatprep.subr.mxu0 0.0
      %302 = vmatpush2.msra.mxu0 0.0
      %303 = vmatprep.mubr.f32.mxu0 0.0
      %304 = vmatmul.mubr.f32.gmra.mxu0 %v235
      %v305 = vpop.f32.mrf.mxu0
      %v306 = vadd.f32 %v231, %v305
      %v307 = vpop.f32.mrf.mxu0
      %308 = vdwg.mxu0
      %s309 = scalar_lea.vmem %s1, 16
      %v310 = vld [vmem:[%s309] sm:$0xff]
      %311 = vrot.lane.b32.xlu0 %v151, 124
      %v312 = vpop.permute.xlu0 %311
      %v314 = vsel %vm157, %v310, 0
      %v316 = vsel %vm161, %v312, 0
      %318 = vmatprep.subr.mxu0 0.0
      %319 = vmatpush1.msra.mxu0 0.0
      %320 = vmatprep.subr.mxu0 0.0
      %321 = vmatpush1.msra.mxu0 0.0
      %322 = vmatprep.subr.mxu0 0.0
      %323 = vmatpush1.msra.mxu0 0.0
      %324 = vmatprep.subr.mxu0 0.0
      %325 = vmatpush1.msra.mxu0 0.0
      %326 = vmatprep.subr.mxu0 0.0
      %327 = vmatpush1.msra.mxu0 0.0
      %328 = vmatprep.subr.mxu0 0.0
      %329 = vmatpush1.msra.mxu0 0.0
      %330 = vmatprep.subr.mxu0 0.0
      %331 = vmatpush1.msra.mxu0 0.0
      %332 = vmatprep.subr.mxu0 0.0
      %333 = vmatpush1.msra.mxu0 0.0
      %334 = vmatprep.subr.mxu0 0.0
      %335 = vmatpush1.msra.mxu0 0.0
      %336 = vmatprep.subr.mxu0 0.0
      %337 = vmatpush1.msra.mxu0 0.0
      %338 = vmatprep.subr.mxu0 0.0
      %339 = vmatpush1.msra.mxu0 0.0
      %340 = vmatprep.subr.mxu0 0.0
      %341 = vmatpush1.msra.mxu0 0.0
      %342 = vmatprep.subr.mxu0 0.0
      %343 = vmatpush1.msra.mxu0 0.0
      %344 = vmatprep.subr.mxu0 0.0
      %345 = vmatpush1.msra.mxu0 0.0
      %346 = vmatprep.subr.mxu0 0.0
      %347 = vmatpush1.msra.mxu0 0.0
      %348 = vmatprep.subr.mxu0 0.0
      %349 = vmatpush1.msra.mxu0 %v316
      %350 = vmatprep.subr.mxu0 0.0
      %351 = vmatpush2.msra.mxu0 0.0
      %352 = vmatprep.subr.mxu0 0.0
      %353 = vmatpush2.msra.mxu0 0.0
      %354 = vmatprep.subr.mxu0 0.0
      %355 = vmatpush2.msra.mxu0 0.0
      %356 = vmatprep.subr.mxu0 0.0
      %357 = vmatpush2.msra.mxu0 0.0
      %358 = vmatprep.subr.mxu0 0.0
      %359 = vmatpush2.msra.mxu0 0.0
      %360 = vmatprep.subr.mxu0 0.0
      %361 = vmatpush2.msra.mxu0 0.0
      %362 = vmatprep.subr.mxu0 0.0
      %363 = vmatpush2.msra.mxu0 0.0
      %364 = vmatprep.subr.mxu0 0.0
      %365 = vmatpush2.msra.mxu0 0.0
      %366 = vmatprep.subr.mxu0 0.0
      %367 = vmatpush2.msra.mxu0 0.0
      %368 = vmatprep.subr.mxu0 0.0
      %369 = vmatpush2.msra.mxu0 0.0
      %370 = vmatprep.subr.mxu0 0.0
      %371 = vmatpush2.msra.mxu0 0.0
      %372 = vmatprep.subr.mxu0 0.0
      %373 = vmatpush2.msra.mxu0 0.0
      %374 = vmatprep.subr.mxu0 0.0
      %375 = vmatpush2.msra.mxu0 0.0
      %376 = vmatprep.subr.mxu0 0.0
      %377 = vmatpush2.msra.mxu0 0.0
      %378 = vmatprep.subr.mxu0 0.0
      %379 = vmatpush2.msra.mxu0 0.0
      %380 = vmatprep.subr.mxu0 0.0
      %381 = vmatpush2.msra.mxu0 0.0
      %382 = vmatprep.mubr.f32.mxu0 0.0
      %383 = vmatmul.mubr.f32.gmra.mxu0 %v314
      %v384 = vpop.f32.mrf.mxu0
      %v385 = vadd.f32 0.0, %v384
      %v386 = vpop.f32.mrf.mxu0
      %387 = vdwg.mxu0
      %v388 = vadd.f32 %v306, %v385
      %vm389 = vcmask 130048
      %v390 = vsel %vm389, %v388, 0.0
      %391 = vadd.xlane.f32.xlu0 %v390
      %v392 = vpop.xlane.xlu0 %391
      %v393 = vmul.f32 %v388, %v388
      %v394 = vsel %vm389, %v393, 0.0
      %395 = vadd.xlane.f32.xlu0 %v394
      %v396 = vpop.xlane.xlu0 %395
      %vm397 = vcmask 7168
      %v398 = vsel %vm397, %v392, %v396
      %vm399 = vcmask 15360
      %400 = vst.msk [vmem:[%s138] sm:$0xff] %vm399, %v398
      %p401 = scmp.lt.s32.totalorder %s13, 1
      %s402 = scalar_select %p401, %s13, 1
      %s403 = smul.addr %s402, 8
      %s404 = scalar_lea.vmem %s2, %s403
      // Predicated region
      $region29: #{tpu_custom_call.1} parent=27 // pred_check
        %p405 = pneg %p78
      $region30: #{tpu_custom_call.1} parent=27 // pred_check_branch
        %407 = sbr.rel (%p405) target = $region32
      $region31: #{tpu_custom_call.1} parent=27 // pred_region
        _
      $region32: #{tpu_custom_call.1} parent=27 // pred_fallthru
        _
    $region28: #{tpu_custom_call.1} parent=5 // pred_fallthru
      _
    %p408 = scmp.le.s32.totalorder 2, %s8
    // Predicated region
    $region33: #{tpu_custom_call.1} parent=5 // pred_check
      %p409 = pneg %p408
    $region34: #{tpu_custom_call.1} parent=5 // pred_check_branch
      %411 = sbr.rel (%p409) target = $region36
    $region35: #{tpu_custom_call.1} parent=5 // pred_region
      %s412 = ssub.s32 %s8, 2
      // Predicated region
      $region37: #{tpu_custom_call.1} parent=35 // pred_check
        %p413 = pneg %p84
      $region38: #{tpu_custom_call.1} parent=35 // pred_check_branch
        %415 = sbr.rel (%p413) target = $region40
      $region39: #{tpu_custom_call.1} parent=35 // pred_region
        %p416 = scmp.lt.s32.totalorder %s14, 1
        %s417 = scalar_select %p416, %s14, 1
        %s418 = smul.addr %s417, 8
        %s419 = scalar_lea.vmem %s2, %s418
      $region40: #{tpu_custom_call.1} parent=35 // pred_fallthru
        _
    $region36: #{tpu_custom_call.1} parent=5 // pred_fallthru
      _
  $region6: #{tpu_custom_call.1} parent=0 // loop_footer
    %s12 = sadd.s32 1, %s8
  $region7: #{tpu_custom_call.1} parent=0 // loop_footer_branch
    %7 = sbr.rel target = $region3
  $region8: #{tpu_custom_call.1} parent=0 // loop_exit
    _

</llo_original>
